<compile_context>
chip_gen: v7x
topology: tpu7x:2x2x1
jax: 0.10.0
libtpu: 0.0.40
codegen_flags: <defaults>
</compile_context>

<pallas_src>
import functools

import jax
import jax.numpy as jnp
from jax import lax
from jax.experimental import pallas as pl
from jax.experimental.pallas import tpu as pltpu


def _round_up(x: int, m: int) -> int:
    return ((x + m - 1) // m) * m


def _margin_loss_kernel(pred_ref, label_ref, out_ref, *, margin, batch,
                        label_num, inv_count):
    """One (TB, Lp) batch tile: adjacent-diff stencil + masked relu-sum."""
    # DMA moves the native dtype; upcast per tile on the VPU.
    t = label_ref[...].astype(jnp.float32) - pred_ref[...].astype(jnp.float32)
    tb, lp = t.shape

    # "next" element along the (descending-label-sorted) label axis.
    # pltpu.roll matches jnp.roll, so shift = Lp - 1 yields t[(i + 1) % Lp];
    # the wrapped lane and all padded lanes/rows are masked below.  Runs on
    # the XLU slot, essentially free next to the VPU adds and the HBM DMA.
    t_next = pltpu.roll(t, shift=lp - 1, axis=1)

    d = (t - t_next) + margin                                 # (TB, Lp) f32

    # Valid positions: real (unpadded) rows, columns 0 .. label_num - 2.
    col = lax.broadcasted_iota(jnp.int32, (tb, lp), 1)
    row = lax.broadcasted_iota(jnp.int32, (tb, lp), 0) + pl.program_id(0) * tb
    valid = (col < label_num - 1) & (row < batch)

    # Fused mask + relu in a single select; padded garbage never reaches sum.
    tile_sum = jnp.sum(jnp.where(valid, jnp.maximum(d, 0.0), 0.0))

    step = pl.program_id(0)

    @pl.when(step == 0)
    def _init():
        out_ref[...] = jnp.zeros_like(out_ref)

    out_ref[...] = out_ref[...] + tile_sum

    @pl.when(step == pl.num_programs(0) - 1)
    def _finalize():
        # Mean over the ORIGINAL B * L * L count, not the padded tile count.
        out_ref[...] = out_ref[...] * inv_count


def margin_loss(pred, label, margin=0.03, block_rows=None):
    """Pallas implementation of MarginLoss.forward(pred, label)."""
    batch, label_num = label.shape

    # TODO(synk): torch.sort + gather (data-dependent permutation) has no
    # clean in-kernel Pallas equivalent; done as XLA glue.  jnp.argsort is
    # stable while torch.sort is not, so tied labels may order differently.
    order = jnp.argsort(-label, axis=-1)
    label_sort = jnp.take_along_axis(label, order, axis=-1)
    pred_sorted = jnp.take_along_axis(pred, order, axis=-1)

    # Pad to TPU-native tiles (sublanes x 128 lanes).  Padded rows / lanes are
    # masked inside the kernel, so zero padding is value-safe.
    itemsizes = (pred_sorted.dtype.itemsize, label_sort.dtype.itemsize)
    row_align = 8 * max(1, 4 // min(itemsizes))
    lp = _round_up(label_num, 128)

    # Batch-tile size: 2 inputs x 2 pipeline buffers (native dtype) plus ~6
    # f32 temporaries, kept under ~10 MiB so it fits every generation's
    # default scoped-VMEM budget (16 MiB v5e, 32 MiB v6e / v7x).
    bytes_per_row = lp * (2 * sum(itemsizes) + 6 * 4)
    tb = (10 * 1024 * 1024) // bytes_per_row
    if block_rows is not None:
        tb = min(tb, block_rows)
    tb = max(row_align, (tb // row_align) * row_align)
    tb = min(tb, 1024, _round_up(batch, row_align))
    bp = _round_up(batch, tb)
    num_tiles = bp // tb

    if bp != batch or lp != label_num:
        pad = ((0, bp - batch), (0, lp - label_num))
        pred_sorted = jnp.pad(pred_sorted, pad)
        label_sort = jnp.pad(label_sort, pad)

    inv_count = 1.0 / float(batch * label_num * label_num)
    out = pl.pallas_call(
        functools.partial(
            _margin_loss_kernel, margin=float(margin), batch=batch,
            label_num=label_num, inv_count=inv_count),
        out_shape=jax.ShapeDtypeStruct((1, 1), jnp.float32),
        grid=(num_tiles,),
        in_specs=[
            pl.BlockSpec((tb, lp), lambda i: (i, 0)),
            pl.BlockSpec((tb, lp), lambda i: (i, 0)),
        ],
        # Resident accumulator: same (0, 0) block every step -> stays in VMEM
        # across the whole grid, written back to HBM once at the end, so the
        # narrow (1, 1) store happens exactly once.
        # (v7x alternative: emit per-tile partial sums with
        #  dimension_semantics=("parallel",) to use both TensorCores.)
        out_specs=pl.BlockSpec((1, 1), lambda i: (0, 0)),
        compiler_params=pltpu.CompilerParams(
            dimension_semantics=("arbitrary",)),
    )(pred_sorted, label_sort)
    return out[0, 0]


def _margin_loss_ref(pred, label, margin=0.03):
    """Pure-JAX reference mirroring the PyTorch module exactly."""
    batch, label_num = label.shape
    order = jnp.argsort(-label, axis=-1)
    label_sort = jnp.take_along_axis(label, order, axis=-1)
    pred_sorted = jnp.take_along_axis(pred, order, axis=-1)
    pred_dis = pred_sorted[:, :, None] - pred_sorted[:, None, :]
    label_dis = label_sort[:, :, None] - label_sort[:, None, :]
    mask = (jnp.triu(jnp.ones((label_num, label_num)), k=2)
            + jnp.tril(jnp.ones((label_num, label_num)), k=0)).astype(bool)
    dis = margin + label_dis - pred_dis
    dis = jnp.where(mask[None], 0.0, dis)
    return jnp.mean(jax.nn.relu(dis))


if __name__ == "__main__":
    # Primary case: matches the module's (batch, label_num) convention.
    k_pred, k_label = jax.random.split(jax.random.PRNGKey(0))
    batch, label_num = 2, 8
    pred = jax.random.normal(k_pred, (batch, label_num), dtype=jnp.float32)
    label = jax.random.uniform(k_label, (batch, label_num), dtype=jnp.float32)

    loss = jax.block_until_ready(margin_loss(pred, label, margin=0.03))
    ref = jax.block_until_ready(_margin_loss_ref(pred, label, margin=0.03))
    assert jnp.allclose(loss, ref, rtol=1e-5, atol=1e-6), (loss, ref)

    # Unaligned shapes + multi-tile grid (exercises lane/row padding, masking
    # and the resident-accumulator init / accumulate / finalize path).
    k_pred2, k_label2 = jax.random.split(jax.random.PRNGKey(1))
    b2, l2 = 20, 130
    pred2 = jax.random.normal(k_pred2, (b2, l2), dtype=jnp.float32)
    label2 = jax.random.uniform(k_label2, (b2, l2), dtype=jnp.float32)

    loss2 = jax.block_until_ready(
        margin_loss(pred2, label2, margin=0.03, block_rows=8))
    ref2 = jax.block_until_ready(_margin_loss_ref(pred2, label2, margin=0.03))
    assert jnp.allclose(loss2, ref2, rtol=1e-5, atol=1e-6), (loss2, ref2)

    print("KERNEL_OK")
</pallas_src>

<mosaic_0001>
module attributes {stable_mosaic.version = 11 : i64} {
  func.func @_margin_loss_kernel(%arg0: i32, %arg1: memref<8x128xf32, #tpu.memory_space<vmem>>, %arg2: memref<8x128xf32, #tpu.memory_space<vmem>>, %arg3: memref<1x1xf32, #tpu.memory_space<vmem>>) attributes {dimension_semantics = [#tpu.dimension_semantics<arbitrary>], iteration_bounds = array<i64: 1>, scalar_prefetch = 0 : i64, scratch_operands = 0 : i64, tpu.core_type = #tpu.core_type<tc>, window_params = [{transform_indices = @transform_0, window_bounds = array<i64: 8, 128>}, {transform_indices = @transform_1, window_bounds = array<i64: 8, 128>}, {pipeline_mode = #tpu.pipeline_mode<synchronous>, transform_indices = @transform_2, window_bounds = array<i64: 1, 1>}]} {
    %c0 = arith.constant 0 : index
    %c0_0 = arith.constant 0 : index
    %0 = vector.load %arg2[%c0, %c0_0] : memref<8x128xf32, #tpu.memory_space<vmem>>, vector<8x128xf32>
    %c0_1 = arith.constant 0 : index
    %c0_2 = arith.constant 0 : index
    %1 = vector.load %arg1[%c0_1, %c0_2] : memref<8x128xf32, #tpu.memory_space<vmem>>, vector<8x128xf32>
    %2 = arith.subf %0, %1 : vector<8x128xf32>
    %c127_i32 = arith.constant 127 : i32
    %3 = tpu.dynamic_rotate %2 by %c127_i32 dim 1 : vector<8x128xf32>, i32 -> vector<8x128xf32>
    %4 = arith.subf %2, %3 : vector<8x128xf32>
    %cst = arith.constant 3.000000e-02 : f32
    %5 = vector.broadcast %cst : f32 to vector<8x128xf32>
    %6 = arith.addf %4, %5 : vector<8x128xf32>
    %7 = tpu.iota {dimensions = array<i32: 1>} : vector<8x128xi32>
    %8 = tpu.iota {dimensions = array<i32: 0>} : vector<8x128xi32>
    %c8_i32 = arith.constant 8 : i32
    %9 = arith.muli %arg0, %c8_i32 : i32
    %10 = vector.broadcast %9 : i32 to vector<8x128xi32>
    %11 = arith.addi %8, %10 : vector<8x128xi32>
    %c7_i32 = arith.constant 7 : i32
    %12 = vector.broadcast %c7_i32 : i32 to vector<8x128xi32>
    %13 = arith.cmpi slt, %7, %12 : vector<8x128xi32>
    %c2_i32 = arith.constant 2 : i32
    %14 = vector.broadcast %c2_i32 : i32 to vector<8x128xi32>
    %15 = arith.cmpi slt, %11, %14 : vector<8x128xi32>
    %16 = arith.andi %13, %15 : vector<8x128xi1>
    %cst_3 = arith.constant 0.000000e+00 : f32
    %17 = vector.broadcast %cst_3 : f32 to vector<8x128xf32>
    %18 = arith.maximumf %6, %17 : vector<8x128xf32>
    %cst_4 = arith.constant 0.000000e+00 : f32
    %19 = vector.broadcast %cst_4 : f32 to vector<8x128xf32>
    %20 = arith.select %16, %18, %19 : vector<8x128xi1>, vector<8x128xf32>
    %21 = vector.shape_cast %20 : vector<8x128xf32> to vector<1x8x128xf32>
    %cst_5 = arith.constant dense<0.000000e+00> : vector<1xf32>
    %22 = vector.multi_reduction <add>, %21, %cst_5 [1, 2] : vector<1x8x128xf32> to vector<1xf32>
    %23 = vector.shape_cast %22 : vector<1xf32> to vector<1x1x1xf32>
    %24 = vector.extract %23[0, 0, 0] : f32 from vector<1x1x1xf32>
    %c0_i32 = arith.constant 0 : i32
    %25 = arith.cmpi eq, %arg0, %c0_i32 : i32
    %26 = arith.extui %25 : i1 to i32
    %c0_i32_6 = arith.constant 0 : i32
    %27 = arith.cmpi ne, %26, %c0_i32_6 : i32
    scf.if %27 {
      %cst_13 = arith.constant 0.000000e+00 : f32
      %35 = vector.broadcast %cst_13 : f32 to vector<1x1xf32>
      %c0_14 = arith.constant 0 : index
      %c0_15 = arith.constant 0 : index
      %36 = vector.load %arg3[%c0_14, %c0_15] : memref<1x1xf32, #tpu.memory_space<vmem>>, vector<1x1xf32>
      tpu.vector_store %arg3[%c0_14, %c0_15], %35 {strides = array<i32>} : memref<1x1xf32, #tpu.memory_space<vmem>>, vector<1x1xf32>,
    } else {
    }
    %c0_7 = arith.constant 0 : index
    %c0_8 = arith.constant 0 : index
    %28 = vector.load %arg3[%c0_7, %c0_8] : memref<1x1xf32, #tpu.memory_space<vmem>>, vector<1x1xf32>
    %29 = vector.broadcast %24 : f32 to vector<1x1xf32>
    %30 = arith.addf %28, %29 : vector<1x1xf32>
    %c0_9 = arith.constant 0 : index
    %c0_10 = arith.constant 0 : index
    %31 = vector.load %arg3[%c0_9, %c0_10] : memref<1x1xf32, #tpu.memory_space<vmem>>, vector<1x1xf32>
    tpu.vector_store %arg3[%c0_9, %c0_10], %30 {strides = array<i32>} : memref<1x1xf32, #tpu.memory_space<vmem>>, vector<1x1xf32>,
    %c0_i32_11 = arith.constant 0 : i32
    %32 = arith.cmpi eq, %arg0, %c0_i32_11 : i32
    %33 = arith.extui %32 : i1 to i32
    %c0_i32_12 = arith.constant 0 : i32
    %34 = arith.cmpi ne, %33, %c0_i32_12 : i32
    scf.if %34 {
      %c0_13 = arith.constant 0 : index
      %c0_14 = arith.constant 0 : index
      %35 = vector.load %arg3[%c0_13, %c0_14] : memref<1x1xf32, #tpu.memory_space<vmem>>, vector<1x1xf32>
      %cst_15 = arith.constant 7.812500e-03 : f32
      %36 = vector.broadcast %cst_15 : f32 to vector<1x1xf32>
      %37 = arith.mulf %35, %36 : vector<1x1xf32>
      %c0_16 = arith.constant 0 : index
      %c0_17 = arith.constant 0 : index
      %38 = vector.load %arg3[%c0_16, %c0_17] : memref<1x1xf32, #tpu.memory_space<vmem>>, vector<1x1xf32>
      tpu.vector_store %arg3[%c0_16, %c0_17], %37 {strides = array<i32>} : memref<1x1xf32, #tpu.memory_space<vmem>>, vector<1x1xf32>,
    } else {
    }
    return
  }
  func.func @transform_0(%arg0: i32) -> (i32, i32) {
    %c0_i32 = arith.constant 0 : i32
    %c0_i32_0 = arith.constant 0 : i32
    return %arg0, %c0_i32 : i32, i32
  }
  func.func @transform_1(%arg0: i32) -> (i32, i32) {
    %c0_i32 = arith.constant 0 : i32
    %c0_i32_0 = arith.constant 0 : i32
    return %arg0, %c0_i32 : i32, i32
  }
  func.func @transform_2(%arg0: i32) -> (i32, i32) {
    %c0_i32 = arith.constant 0 : i32
    %c0_i32_0 = arith.constant 0 : i32
    %c0_i32_1 = arith.constant 0 : i32
    return %c0_i32, %c0_i32_0 : i32, i32
  }
}

</mosaic_0001>

<llo_original>
// kernel: tpu_custom_call.1
$region0: #{tpu_custom_call.1}
  #allocation0 [shape = 'u32[]', space=smem, size = 0x4, offset = 0x4, fixed_abs, tag = 'smem constant byte address 0x4 - core index']
  #allocation1 [shape = 'u32[144,128]{1,0:T(1,128)}', space=vmem, size = 0x12000, scoped, tag = 'internal scratch']
  %s0 = inlined_call_operand.hbm [shape: f32[8,128], index: 0, kind: input, shape index: {}]
  %s1 = inlined_call_operand.hbm [shape: f32[8,128], index: 1, kind: input, shape index: {}]
  %s2 = inlined_call_operand.hbm [shape: f32[1,1], index: 2, kind: output, shape index: {}]
  %s3 = sld [smem:[#allocation0]]
  $region34: #{tpu_custom_call.1} parent=0
    _
  %s5 = ssub.s32 1, %s3
  %s6 = scalar_select 0, %s5, %s3
  $region1: #{tpu_custom_call.1} parent=0
    #allocation2 [shape = 'u8[4096]{0}', space=vmem, size = 0x1000, scoped, tag = 'input window, operand 0, single buffered']
    #allocation3 [shape = 's32[1]{0}', space=sflag, size = 0x4, scoped, tag = 'scoped memory for tpu_custom_call.1']
    #allocation4 [shape = 's32[1]{0}', space=sflag, size = 0x4, scoped, tag = 'scoped memory for tpu_custom_call.1']
    #allocation5 [shape = 'u8[4096]{0}', space=vmem, size = 0x1000, scoped, tag = 'input window, operand 1, single buffered']
    #allocation6 [shape = 's32[1]{0}', space=sflag, size = 0x4, scoped, tag = 'scoped memory for tpu_custom_call.1']
    #allocation7 [shape = 'u8[512]{0}', space=vmem, size = 0x400, scoped, tag = 'output window, operand 0, single buffered']
    %7 = vsyncpa [#allocation3], 0
    %8 = vsyncpa [#allocation6], 0
    %9 = vsyncpa [#allocation4], 0
    // Predicated region
    $region2: #{tpu_custom_call.1} parent=1 // pred_check
      _
    $region3: #{tpu_custom_call.1} parent=1 // pred_check_branch
      %11 = sbr.rel (0) target = $region5
    $region4: #{tpu_custom_call.1} parent=1 // pred_region
      %s13 = ssub.s32 128, 128
      %14 = vsyncadd [#allocation3], %s13
      %s16 = sshll.u32 [#allocation2], 4
      %s17 = int_to_ptr.vmem [resolvable:$true] %s16
      %19 = dma.hbm_to_vmem [thread:$0]  %s0, 128, %s17, [#allocation3]
    $region5: #{tpu_custom_call.1} parent=1 // pred_fallthru
      _
    // Predicated region
    $region6: #{tpu_custom_call.1} parent=1 // pred_check
      _
    $region7: #{tpu_custom_call.1} parent=1 // pred_check_branch
      %21 = sbr.rel (0) target = $region9
    $region8: #{tpu_custom_call.1} parent=1 // pred_region
      %s23 = ssub.s32 128, 128
      %24 = vsyncadd [#allocation6], %s23
      %s26 = sshll.u32 [#allocation5], 4
      %s27 = int_to_ptr.vmem [resolvable:$true] %s26
      %29 = dma.hbm_to_vmem [thread:$0]  %s1, 128, %s27, [#allocation6]
    $region9: #{tpu_custom_call.1} parent=1 // pred_fallthru
      _
    // Predicated region
    $region10: #{tpu_custom_call.1} parent=1 // pred_check
      _
    $region11: #{tpu_custom_call.1} parent=1 // pred_check_branch
      %31 = sbr.rel (0) target = $region13
    $region12: #{tpu_custom_call.1} parent=1 // pred_region
      %32 = dma.done [#allocation3], 128
    $region13: #{tpu_custom_call.1} parent=1 // pred_fallthru
      _
    // Predicated region
    $region14: #{tpu_custom_call.1} parent=1 // pred_check
      _
    $region15: #{tpu_custom_call.1} parent=1 // pred_check_branch
      %34 = sbr.rel (0) target = $region17
    $region16: #{tpu_custom_call.1} parent=1 // pred_region
      %35 = dma.done [#allocation6], 128
    $region17: #{tpu_custom_call.1} parent=1 // pred_fallthru
      _
    %v36 = vld [vmem:[#allocation5] sm:$0xff]
    %v37 = vld [vmem:[#allocation2] sm:$0xff]
    %v38 = vsub.f32 %v36, %v37
    %39 = vrot.lane.b32.xlu0 %v38, 127
    %v40 = vpop.permute.xlu0 %39
    %v41 = vsub.f32 %v38, %v40
    %v42 = vadd.f32 %v41, 0.03
    %v43 = vlaneseq
    %v44 = vand.u32 %v43, 127
    %v45 = vlaneseq
    %v46 = vshrl.u32 %v45, 7
    %s47 = smul.u32 0, 8
    %v48 = vstv %s47
    %v49 = vadd.s32 %v46, %v48
    %vm50 = vcmp.lt.s32.totalorder %v44, 7
    %vm51 = vcmp.lt.s32.totalorder %v49, 2
    %vm52 = vmand %vm50, %vm51
    %v53 = vmax.f32 %v42, 0.0
    %v54 = vsel %vm52, %v53, 0.0
    %55 = vadd.xlane.f32.xlu0 %v54
    %v56 = vpop.xlane.xlu0 %55
    %v57 = vrot.slane %v56, 4
    %v58 = vadd.f32 %v56, %v57
    %v59 = vrot.slane %v58, 2
    %v60 = vadd.f32 %v58, %v59
    %v61 = vrot.slane %v60, 1
    %v62 = vadd.f32 %v60, %v61
    %s63 = vtos %v62
    %p64 = scmp.eq.s32.totalorder 0, 0
    // Predicated region
    $region18: #{tpu_custom_call.1} parent=1 // pred_check
      %p65 = pneg %p64
    $region19: #{tpu_custom_call.1} parent=1 // pred_check_branch
      %67 = sbr.rel (%p65) target = $region21
    $region20: #{tpu_custom_call.1} parent=1 // pred_region
      %vm68 = vcmask 0
      %69 = vst.msk [vmem:[#allocation7] sm:$0x1] %vm68, 0.0
    $region21: #{tpu_custom_call.1} parent=1 // pred_fallthru
      _
    %v70 = vld [vmem:[#allocation7] sm:$0x1]
    %v71 = vstv %s63
    %v72 = vadd.f32 %v70, %v71
    %vm73 = vcmask 0
    %74 = vst.msk [vmem:[#allocation7] sm:$0x1] %vm73, %v72
    // Predicated region
    $region22: #{tpu_custom_call.1} parent=1 // pred_check
      %p75 = pneg %p64
    $region23: #{tpu_custom_call.1} parent=1 // pred_check_branch
      %77 = sbr.rel (%p75) target = $region25
    $region24: #{tpu_custom_call.1} parent=1 // pred_region
      %v78 = vld [vmem:[#allocation7] sm:$0x1]
      %v79 = vmul.f32 %v78, 0.0078125
      %80 = vst.msk [vmem:[#allocation7] sm:$0x1] %vm73, %v79
    $region25: #{tpu_custom_call.1} parent=1 // pred_fallthru
      _
    // Predicated region
    $region26: #{tpu_custom_call.1} parent=1 // pred_check
      _
    $region27: #{tpu_custom_call.1} parent=1 // pred_check_branch
      %82 = sbr.rel (0) target = $region29
    $region28: #{tpu_custom_call.1} parent=1 // pred_region
      %s84 = ssub.s32 16, 16
      %85 = vsyncadd [#allocation4], %s84
      %s87 = sshll.u32 [#allocation7], 4
      %s88 = int_to_ptr.vmem [resolvable:$true] %s87
      %90 = dma.vmem_to_hbm [thread:$0]  %s88, 16, %s2, [#allocation4]
    $region29: #{tpu_custom_call.1} parent=1 // pred_fallthru
      _
    // Predicated region
    $region30: #{tpu_custom_call.1} parent=1 // pred_check
      _
    $region31: #{tpu_custom_call.1} parent=1 // pred_check_branch
      %92 = sbr.rel (0) target = $region33
    $region32: #{tpu_custom_call.1} parent=1 // pred_region
      %93 = dma.done [#allocation4], 16
    $region33: #{tpu_custom_call.1} parent=1 // pred_fallthru
      _
    %94 = vsyncpa [#allocation3], 1
    %95 = vsyncpa [#allocation6], 1
    %96 = vsyncpa [#allocation4], 1

</llo_original>
